<compile_context>
chip_gen: v7x
topology: tpu7x:2x2x1
jax: 0.10.0
libtpu: 0.0.40
codegen_flags: <defaults>
</compile_context>

<pallas_src>
import math
import jax
import jax.numpy as jnp
from jax import lax
from jax.experimental import pallas as pl
from jax.experimental.pallas import tpu as pltpu

EPS = 1e-5  # PyTorch LayerNorm default

_TARGET_BLOCK_BYTES = 4 * 1024 * 1024   # ~4 MiB per (row_tile, H) block (input dtype)
_MAX_ROW_TILE = 2048
_VMEM_LIMIT_BYTES = 32 * 1024 * 1024    # safe on v5e/v6e (128 MiB) and v7x (64 MiB phys)


def _trans_kernel(x_ref, g_ref, b_ref, o_ref):
    # x_ref: (row_tile, H) tile of rows; g_ref/b_ref: (1, H) affine params.
    x = x_ref[...].astype(jnp.float32)

    # LayerNorm over last dim (biased variance, as in torch.nn.LayerNorm).
    mean = jnp.mean(x, axis=-1, keepdims=True)
    centered = x - mean
    var = jnp.mean(centered * centered, axis=-1, keepdims=True)
    xn = centered * lax.rsqrt(var + EPS)

    # Elementwise affine (gamma=1 / beta=0 when elementwise_affine=False).
    y = xn * g_ref[...].astype(jnp.float32) + b_ref[...].astype(jnp.float32)

    # Exact GELU (matches nn.GELU() default, erf formulation).
    y = 0.5 * y * (1.0 + lax.erf(y * (1.0 / math.sqrt(2.0))))

    # Dropout in eval mode == identity.
    o_ref[...] = y.astype(o_ref.dtype)


def _choose_row_tile(rows, H, itemsize):
    """Row tile so one block is ~4 MiB in the input dtype, capped at 2048 rows."""
    max_rows = max(8, _TARGET_BLOCK_BYTES // max(1, H * itemsize))
    max_rows = min(max_rows, _MAX_ROW_TILE)
    if rows <= max_rows:
        # Full extent along the row axis (always a legal block dim).
        return rows
    # Multiple of 8 to satisfy the (8, 128) sublane constraint.
    return max(8, (max_rows // 8) * 8)


def trans_forward(x, gamma=None, beta=None, *, drop_rate=0.0, row_tile=None):
    """x: (B, S, H) -> (B, S, H). LayerNorm(H) -> GELU -> Dropout(eval).

    gamma/beta = None reproduces LayerNorm(..., elementwise_affine=False).
    """
    assert drop_rate == 0.0, "only eval-mode dropout implemented"
    B, S, H = x.shape
    rows = B * S
    if row_tile is None:
        row_tile = _choose_row_tile(rows, H, jnp.dtype(x.dtype).itemsize)

    if gamma is None:
        gamma = jnp.ones((H,), dtype=jnp.float32)
    if beta is None:
        beta = jnp.zeros((H,), dtype=jnp.float32)

    x2 = x.reshape(rows, H)
    g2 = gamma.reshape(1, H)
    b2 = beta.reshape(1, H)

    grid = (pl.cdiv(rows, row_tile),)

    itemsize = jnp.dtype(x.dtype).itemsize
    cost = pl.CostEstimate(
        flops=12 * rows * H,                      # LN + affine + GELU arithmetic
        transcendentals=2 * rows * H,             # erf + rsqrt (amortized)
        bytes_accessed=2 * rows * H * itemsize + 2 * H * 4,
    )

    out2 = pl.pallas_call(
        _trans_kernel,
        out_shape=jax.ShapeDtypeStruct((rows, H), x.dtype),
        grid_spec=pltpu.PrefetchScalarGridSpec(
            num_scalar_prefetch=0,
            grid=grid,
            in_specs=[
                pl.BlockSpec((row_tile, H), lambda i: (i, 0)),
                pl.BlockSpec((1, H), lambda i: (0, 0)),
                pl.BlockSpec((1, H), lambda i: (0, 0)),
            ],
            out_specs=pl.BlockSpec((row_tile, H), lambda i: (i, 0)),
        ),
        compiler_params=pltpu.CompilerParams(
            dimension_semantics=("parallel",),
            vmem_limit_bytes=_VMEM_LIMIT_BYTES,
        ),
        cost_estimate=cost,
    )(x2, g2, b2)

    return out2.reshape(B, S, H)


def _reference(x, gamma=None, beta=None):
    H = x.shape[-1]
    if gamma is None:
        gamma = jnp.ones((H,), dtype=jnp.float32)
    if beta is None:
        beta = jnp.zeros((H,), dtype=jnp.float32)
    x32 = x.astype(jnp.float32)
    mean = jnp.mean(x32, axis=-1, keepdims=True)
    var = jnp.mean((x32 - mean) ** 2, axis=-1, keepdims=True)
    xn = (x32 - mean) / jnp.sqrt(var + EPS)
    y = xn * gamma.astype(jnp.float32) + beta.astype(jnp.float32)
    y = 0.5 * y * (1.0 + lax.erf(y / jnp.sqrt(2.0)))
    return y.astype(x.dtype)


if __name__ == "__main__":
    key = jax.random.PRNGKey(0)
    k0, k1, k2, k3, k4, k5 = jax.random.split(key, 6)

    # --- Small config matching the module spec: Trans(0.0, H, 'gelu', True) ---
    B, S, H = 2, 8, 32
    x = jax.random.normal(k0, (B, S, H), dtype=jnp.float32)
    gamma = 1.0 + 0.1 * jax.random.normal(k1, (H,), dtype=jnp.float32)
    beta = 0.1 * jax.random.normal(k2, (H,), dtype=jnp.float32)

    out = trans_forward(x, gamma, beta)
    out = jax.block_until_ready(out)
    ref = _reference(x, gamma, beta)
    assert out.shape == (B, S, H)
    assert jnp.allclose(out, ref, atol=1e-5, rtol=1e-5), "mismatch vs reference (small)"

    # --- Small config with elementwise_affine=False (aff=False) ---
    out_na = trans_forward(x)
    out_na = jax.block_until_ready(out_na)
    ref_na = _reference(x)
    assert jnp.allclose(out_na, ref_na, atol=1e-5, rtol=1e-5), "mismatch vs reference (no-affine)"

    # --- Medium config exercising large row tiles + the cdiv tail block ---
    B2, S2, H2 = 4, 640, 256   # rows = 2560, row_tile = 2048 -> 2 grid steps (tail 512)
    x_m = jax.random.normal(k3, (B2, S2, H2), dtype=jnp.bfloat16)
    gamma_m = 1.0 + 0.1 * jax.random.normal(k4, (H2,), dtype=jnp.float32)
    beta_m = 0.1 * jax.random.normal(k5, (H2,), dtype=jnp.float32)

    out_m = trans_forward(x_m, gamma_m, beta_m)
    out_m = jax.block_until_ready(out_m)
    ref_m = _reference(x_m, gamma_m, beta_m)
    assert out_m.shape == (B2, S2, H2)
    assert jnp.allclose(out_m.astype(jnp.float32), ref_m.astype(jnp.float32),
                        atol=2e-2, rtol=2e-2), "mismatch vs reference (medium, bf16)"

    print("KERNEL_OK")
</pallas_src>

<mosaic_0001>
module attributes {stable_mosaic.version = 11 : i64} {
  func.func @_trans_kernel(%arg0: i32, %arg1: memref<16x32xf32, #tpu.memory_space<vmem>>, %arg2: memref<1x32xf32, #tpu.memory_space<vmem>>, %arg3: memref<1x32xf32, #tpu.memory_space<vmem>>, %arg4: memref<16x32xf32, #tpu.memory_space<vmem>>) attributes {dimension_semantics = [#tpu.dimension_semantics<parallel>], iteration_bounds = array<i64: 1>, scalar_prefetch = 0 : i64, scratch_operands = 0 : i64, tpu.core_type = #tpu.core_type<tc>, window_params = [{transform_indices = @transform_0, window_bounds = array<i64: 16, 32>}, {pipeline_mode = #tpu.pipeline_mode<synchronous>, transform_indices = @transform_1, window_bounds = array<i64: 1, 32>}, {pipeline_mode = #tpu.pipeline_mode<synchronous>, transform_indices = @transform_2, window_bounds = array<i64: 1, 32>}, {transform_indices = @transform_3, window_bounds = array<i64: 16, 32>}]} {
    %c0 = arith.constant 0 : index
    %c0_0 = arith.constant 0 : index
    %0 = vector.load %arg1[%c0, %c0_0] : memref<16x32xf32, #tpu.memory_space<vmem>>, vector<16x32xf32>
    %cst = arith.constant dense<0.000000e+00> : vector<16xf32>
    %1 = vector.multi_reduction <add>, %0, %cst [1] : vector<16x32xf32> to vector<16xf32>
    %2 = vector.shape_cast %1 : vector<16xf32> to vector<16x1xf32>
    %cst_1 = arith.constant 3.200000e+01 : f32
    %3 = vector.broadcast %cst_1 : f32 to vector<16x1xf32>
    %4 = arith.divf %2, %3 : vector<16x1xf32>
    %5 = vector.broadcast %4 : vector<16x1xf32> to vector<16x32xf32>
    %6 = arith.subf %0, %5 : vector<16x32xf32>
    %7 = arith.mulf %6, %6 : vector<16x32xf32>
    %cst_2 = arith.constant dense<0.000000e+00> : vector<16xf32>
    %8 = vector.multi_reduction <add>, %7, %cst_2 [1] : vector<16x32xf32> to vector<16xf32>
    %9 = vector.shape_cast %8 : vector<16xf32> to vector<16x1xf32>
    %cst_3 = arith.constant 3.200000e+01 : f32
    %10 = vector.broadcast %cst_3 : f32 to vector<16x1xf32>
    %11 = arith.divf %9, %10 : vector<16x1xf32>
    %cst_4 = arith.constant 9.99999974E-6 : f32
    %12 = vector.broadcast %cst_4 : f32 to vector<16x1xf32>
    %13 = arith.addf %11, %12 : vector<16x1xf32>
    %14 = math.rsqrt %13 : vector<16x1xf32>
    %15 = vector.broadcast %14 : vector<16x1xf32> to vector<16x32xf32>
    %16 = arith.mulf %6, %15 : vector<16x32xf32>
    %c0_5 = arith.constant 0 : index
    %c0_6 = arith.constant 0 : index
    %17 = vector.load %arg2[%c0_5, %c0_6] : memref<1x32xf32, #tpu.memory_space<vmem>>, vector<1x32xf32>
    %18 = vector.broadcast %17 : vector<1x32xf32> to vector<16x32xf32>
    %19 = arith.mulf %16, %18 : vector<16x32xf32>
    %c0_7 = arith.constant 0 : index
    %c0_8 = arith.constant 0 : index
    %20 = vector.load %arg3[%c0_7, %c0_8] : memref<1x32xf32, #tpu.memory_space<vmem>>, vector<1x32xf32>
    %21 = vector.broadcast %20 : vector<1x32xf32> to vector<16x32xf32>
    %22 = arith.addf %19, %21 : vector<16x32xf32>
    %cst_9 = arith.constant 5.000000e-01 : f32
    %23 = vector.broadcast %cst_9 : f32 to vector<16x32xf32>
    %24 = arith.mulf %23, %22 : vector<16x32xf32>
    %cst_10 = arith.constant 0.707106769 : f32
    %25 = vector.broadcast %cst_10 : f32 to vector<16x32xf32>
    %26 = arith.mulf %22, %25 : vector<16x32xf32>
    %27 = math.erf %26 : vector<16x32xf32>
    %cst_11 = arith.constant 1.000000e+00 : f32
    %28 = vector.broadcast %cst_11 : f32 to vector<16x32xf32>
    %29 = arith.addf %28, %27 : vector<16x32xf32>
    %30 = arith.mulf %24, %29 : vector<16x32xf32>
    %c0_12 = arith.constant 0 : index
    %c0_13 = arith.constant 0 : index
    %31 = vector.load %arg4[%c0_12, %c0_13] : memref<16x32xf32, #tpu.memory_space<vmem>>, vector<16x32xf32>
    tpu.vector_store %arg4[%c0_12, %c0_13], %30 {strides = array<i32>} : memref<16x32xf32, #tpu.memory_space<vmem>>, vector<16x32xf32>,
    return
  }
  func.func @transform_0(%arg0: i32) -> (i32, i32) {
    %c0_i32 = arith.constant 0 : i32
    %c0_i32_0 = arith.constant 0 : i32
    return %arg0, %c0_i32 : i32, i32
  }
  func.func @transform_1(%arg0: i32) -> (i32, i32) {
    %c0_i32 = arith.constant 0 : i32
    %c0_i32_0 = arith.constant 0 : i32
    %c0_i32_1 = arith.constant 0 : i32
    return %c0_i32, %c0_i32_0 : i32, i32
  }
  func.func @transform_2(%arg0: i32) -> (i32, i32) {
    %c0_i32 = arith.constant 0 : i32
    %c0_i32_0 = arith.constant 0 : i32
    %c0_i32_1 = arith.constant 0 : i32
    return %c0_i32, %c0_i32_0 : i32, i32
  }
  func.func @transform_3(%arg0: i32) -> (i32, i32) {
    %c0_i32 = arith.constant 0 : i32
    %c0_i32_0 = arith.constant 0 : i32
    return %arg0, %c0_i32 : i32, i32
  }
}

</mosaic_0001>

<llo_original>
// kernel: tpu_custom_call.1
$region0: #{tpu_custom_call.1}
  #allocation0 [shape = 'u32[]', space=smem, size = 0x4, offset = 0x4, fixed_abs, tag = 'smem constant byte address 0x4 - core index']
  #allocation1 [shape = 'u32[144,128]{1,0:T(1,128)}', space=vmem, size = 0x12000, scoped, tag = 'internal scratch']
  %s0 = inlined_call_operand.hbm [shape: f32[16,32], index: 0, kind: input, shape index: {}]
  %s1 = inlined_call_operand.vmem [shape: f32[1,32], index: 1, kind: input, shape index: {}]
  %s2 = inlined_call_operand.vmem [shape: f32[1,32], index: 2, kind: input, shape index: {}]
  %s3 = inlined_call_operand.hbm [shape: f32[16,32], index: 3, kind: output, shape index: {}]
  %s4 = sld [smem:[#allocation0]]
  $region26: #{tpu_custom_call.1} parent=0
    _
  %s6 = ssub.s32 1, %s4
  %s7 = scalar_select 0, %s6, %s4
  $region1: #{tpu_custom_call.1} parent=0
    #allocation2 [shape = 'u8[8192]{0}', space=vmem, size = 0x2000, scoped, tag = 'input window, operand 0, single buffered']
    #allocation3 [shape = 's32[1]{0}', space=sflag, size = 0x4, scoped, tag = 'scoped memory for tpu_custom_call.1']
    #allocation4 [shape = 's32[1]{0}', space=sflag, size = 0x4, scoped, tag = 'scoped memory for tpu_custom_call.1']
    #allocation5 [shape = 'u8[8192]{0}', space=vmem, size = 0x2000, scoped, tag = 'output window, operand 0, single buffered']
    %8 = vsyncpa [#allocation3], 0
    %9 = vsyncpa [#allocation4], 0
    // Predicated region
    $region2: #{tpu_custom_call.1} parent=1 // pred_check
      _
    $region3: #{tpu_custom_call.1} parent=1 // pred_check_branch
      %11 = sbr.rel (0) target = $region5
    $region4: #{tpu_custom_call.1} parent=1 // pred_region
      %s13 = ssub.s32 256, 256
      %14 = vsyncadd [#allocation3], %s13
      %s15 = sshll.u32 [#allocation2], 4
      %s16 = int_to_ptr.vmem [resolvable:$true] %s15
      %21 = dma.hbm_to_vmem [thread:$0]  %s0, 256, %s16, [#allocation3], 128, 128, 8
    $region5: #{tpu_custom_call.1} parent=1 // pred_fallthru
      _
    // Predicated region
    $region6: #{tpu_custom_call.1} parent=1 // pred_check
      _
    $region7: #{tpu_custom_call.1} parent=1 // pred_check_branch
      %23 = sbr.rel (0) target = $region9
    $region8: #{tpu_custom_call.1} parent=1 // pred_region
      _
    $region9: #{tpu_custom_call.1} parent=1 // pred_fallthru
      _
    // Predicated region
    $region10: #{tpu_custom_call.1} parent=1 // pred_check
      _
    $region11: #{tpu_custom_call.1} parent=1 // pred_check_branch
      %25 = sbr.rel (0) target = $region13
    $region12: #{tpu_custom_call.1} parent=1 // pred_region
      _
    $region13: #{tpu_custom_call.1} parent=1 // pred_fallthru
      _
    // Predicated region
    $region14: #{tpu_custom_call.1} parent=1 // pred_check
      _
    $region15: #{tpu_custom_call.1} parent=1 // pred_check_branch
      %27 = sbr.rel (0) target = $region17
    $region16: #{tpu_custom_call.1} parent=1 // pred_region
      %28 = dma.done [#allocation3], 256
    $region17: #{tpu_custom_call.1} parent=1 // pred_fallthru
      _
    %v29 = vld [vmem:[#allocation2] sm:$0xff]
    %v30 = vld [vmem:[#allocation2 + $0x8] sm:$0xff]
    %vm31 = vcmask 261120
    %v32 = vsel %vm31, %v29, 0.0
    %33 = vadd.xlane.f32.xlu0 %v32
    %v34 = vpop.xlane.xlu0 %33
    %v35 = vsel %vm31, %v30, 0.0
    %36 = vadd.xlane.f32.xlu0 %v35
    %v37 = vpop.xlane.xlu0 %36
    %v38 = vrcp.pop 32.0
    %v39 = vmul.f32 %v34, %v38
    %v40 = vmul.f32 %v37, %v38
    %v41 = vsub.f32 %v29, %v39
    %v42 = vsub.f32 %v30, %v40
    %v43 = vmul.f32 %v41, %v41
    %v44 = vmul.f32 %v42, %v42
    %v45 = vsel %vm31, %v43, 0.0
    %46 = vadd.xlane.f32.xlu0 %v45
    %v47 = vpop.xlane.xlu0 %46
    %v48 = vsel %vm31, %v44, 0.0
    %49 = vadd.xlane.f32.xlu0 %v48
    %v50 = vpop.xlane.xlu0 %49
    %v51 = vmul.f32 %v47, %v38
    %v52 = vmul.f32 %v50, %v38
    %v53 = vadd.f32 %v51, 1e-05
    %v54 = vadd.f32 %v52, 1e-05
    %v55 = vrsqrt.pop %v53
    %v56 = vrsqrt.pop %v54
    %v57 = vmul.f32 %v41, %v55
    %v58 = vmul.f32 %v42, %v56
    %v59 = vld [vmem:[%s1] sm:$0x1]
    %v61 = vlaneseq
    %v62 = vshrl.u32 %v61, 7
    %v63 = vsub.s32 0, %v62
    %v64 = vrot.slane %v59, %v63
    %v66 = vmul.f32 %v57, %v64
    %v67 = vmul.f32 %v58, %v64
    %v68 = vld [vmem:[%s2] sm:$0x1]
    %v70 = vlaneseq
    %v71 = vshrl.u32 %v70, 7
    %v72 = vsub.s32 0, %v71
    %v73 = vrot.slane %v68, %v72
    %v75 = vadd.f32 %v66, %v73
    %v76 = vadd.f32 %v67, %v73
    %v77 = vmul.f32 %v75, 0.5
    %v78 = vmul.f32 %v76, 0.5
    %v79 = vmul.f32 %v75, 0.70710677
    %v80 = vmul.f32 %v76, 0.70710677
    %v81 = verf.f32.pop %v79
    %v82 = verf.f32.pop %v80
    %v83 = vadd.f32 %v81, 1.0
    %v84 = vadd.f32 %v82, 1.0
    %v85 = vmul.f32 %v77, %v83
    %v86 = vmul.f32 %v78, %v84
    %87 = vst.msk [vmem:[#allocation5] sm:$0xff] %vm31, %v85
    %88 = vst.msk [vmem:[#allocation5 + $0x8] sm:$0xff] %vm31, %v86
    // Predicated region
    $region18: #{tpu_custom_call.1} parent=1 // pred_check
      _
    $region19: #{tpu_custom_call.1} parent=1 // pred_check_branch
      %90 = sbr.rel (0) target = $region21
    $region20: #{tpu_custom_call.1} parent=1 // pred_region
      %s92 = ssub.s32 256, 256
      %93 = vsyncadd [#allocation4], %s92
      %s94 = sshll.u32 [#allocation5], 4
      %s95 = int_to_ptr.vmem [resolvable:$true] %s94
      %100 = dma.vmem_to_hbm [thread:$0]  %s95, 256, %s3, [#allocation4], 128, 128, 8
    $region21: #{tpu_custom_call.1} parent=1 // pred_fallthru
      _
    // Predicated region
    $region22: #{tpu_custom_call.1} parent=1 // pred_check
      _
    $region23: #{tpu_custom_call.1} parent=1 // pred_check_branch
      %102 = sbr.rel (0) target = $region25
    $region24: #{tpu_custom_call.1} parent=1 // pred_region
      %103 = dma.done [#allocation4], 256
    $region25: #{tpu_custom_call.1} parent=1 // pred_fallthru
      _
    %104 = vsyncpa [#allocation3], 1
    %105 = vsyncpa [#allocation4], 1

</llo_original>
